<compile_context>
chip_gen: v5e
topology: v5e:2x2
jax: 0.10.0
libtpu: 0.0.40
codegen_flags: <defaults>
</compile_context>

<pallas_src>
import functools

import jax
import jax.numpy as jnp
from jax.experimental import pallas as pl
from jax.experimental.pallas import tpu as pltpu


def _round_up(n, m):
    return ((n + m - 1) // m) * m


def _vmem_capacity_bytes():
    """Per-generation VMEM capacity (64 MiB v7x, 128 MiB v5e/v6e); conservative fallback."""
    try:
        info = pltpu.get_tpu_info()
        for name in ("vmem_capacity_bytes", "vmem_bytes", "vmem_size_bytes"):
            cap = getattr(info, name, None)
            if cap:
                return int(cap)
    except Exception:
        pass
    return 64 << 20  # assume the smallest (v7x per-TensorCore)


def _kmm_fused_kernel(x_ref, w_ref, b_ref, out_ref, *, var_col, apply_elu):
    """One lane-dense GEMM (+ optional in-register ELU on the var column).

    x_ref:   (TB, F)      batch tile
    w_ref:   (F, Cpad)    [Wpi | Wmu | Wvar | 0-pad]   (resident across tiles)
    b_ref:   (1, Cpad)    [bpi | bmu | bvar | 0-pad]
    out_ref: (TB, Cpad)   packed slab: cols [0:C)=pi, [C:2C)=mu, [2C]=var scalar (or raw v)
    """
    y = jnp.dot(x_ref[...], w_ref[...], preferred_element_type=jnp.float32) + b_ref[...]
    if apply_elu:
        # ELU(alpha=1) + 1 + 1 + 1e-7 on the var column only; clamp expm1 input so large
        # positive pi/mu logits never overflow (forward-safe AND grad-safe through the where).
        elu = jnp.where(y > 0, y, jnp.expm1(jnp.minimum(y, 0.0)))
        var_val = jnp.float32(1e-07) + 1.0 + 1.0 + elu
        col = jax.lax.broadcasted_iota(jnp.int32, y.shape, dimension=1)
        y = jnp.where(col == var_col, var_val, y)
    out_ref[...] = y.astype(out_ref.dtype)


def prepare_params(w_pi, b_pi, w_mu, b_mu, w_var, b_var, *, compute_dtype=jnp.float32):
    """One-time weight prep: transpose, concatenate along classes, pad lanes to 128.

    Production: compute_dtype=jnp.bfloat16 halves the weight + activation HBM reads
    (f32 accumulation is kept inside the kernel). Bias stays f32 (tiny).
    """
    C, F = w_pi.shape
    cpad = _round_up(2 * C + 1, 128)

    w_cat = jnp.zeros((F, cpad), compute_dtype)
    w_cat = w_cat.at[:, :C].set(jnp.transpose(w_pi).astype(compute_dtype))
    w_cat = w_cat.at[:, C:2 * C].set(jnp.transpose(w_mu).astype(compute_dtype))
    w_cat = w_cat.at[:, 2 * C:2 * C + 1].set(jnp.transpose(w_var).astype(compute_dtype))

    b_cat = jnp.zeros((1, cpad), jnp.float32)
    b_cat = b_cat.at[0, :C].set(b_pi.astype(jnp.float32))
    b_cat = b_cat.at[0, C:2 * C].set(b_mu.astype(jnp.float32))
    b_cat = b_cat.at[0, 2 * C].set(b_var.astype(jnp.float32)[0])
    return w_cat, b_cat


@functools.partial(
    jax.jit,
    static_argnames=("num_classes", "elu_in_kernel", "custom_buffering",
                     "return_packed", "out_dtype"))
def kmm_forward(x, w_cat, b_cat, *, num_classes, elu_in_kernel=None,
                custom_buffering=True, return_packed=False, out_dtype=jnp.float32):
    """x: (B, F).  w_cat: (F, Cpad), b_cat: (1, Cpad) from prepare_params().

    return_packed=True returns the raw (B, Cpad) slab (cols [0:C)=pi, [C:2C)=mu, [2C]=var)
    so a fused consumer can skip the slice / var-broadcast HBM pass.
    """
    B, F = x.shape
    Fw, cpad = w_cat.shape
    if Fw != F:
        raise ValueError(f"w_cat rows {Fw} != in_features {F}")
    C = num_classes
    var_col = 2 * C

    if return_packed:
        elu_in_kernel = True            # packed slab must be self-contained
    if elu_in_kernel is None:
        # Large F: the EUP work hides under the long x DMA / matmul (free filler).
        # Small F: keep the single EUP off the critical slot; do it on B elems in the wrapper.
        elu_in_kernel = F >= 512

    if x.dtype != w_cat.dtype:
        x = x.astype(w_cat.dtype)       # production: bf16 activations, f32 accumulation

    x_elem = jnp.dtype(x.dtype).itemsize
    w_elem = jnp.dtype(w_cat.dtype).itemsize
    out_elem = jnp.dtype(out_dtype).itemsize

    # ---------------- per-generation VMEM budget + tile sizing -----------------------------
    vmem_cap = _vmem_capacity_bytes()                 # 64 MiB (v7x) / 128 MiB (v5e/v6e)
    vmem_budget = int(0.75 * vmem_cap)                # scoped limit we will request

    w_bufs = 1 if custom_buffering else 2             # resident weights: single-buffered
    resident = w_bufs * (F * cpad * w_elem + cpad * 4)

    # Per batch-row VMEM cost: double-buffered x tile + double-buffered output slab.
    per_row = 2 * F * x_elem + 2 * cpad * out_elem
    avail = max(int(0.70 * vmem_budget) - resident, 8 * per_row)
    tb = (avail // per_row) // 8 * 8                  # largest multiple-of-8 tile that fits
    tb = max(8, min(tb, 2048, _round_up(B, 8)))
    if B > 8 and tb >= B:
        # Split so the "parallel" grid has >=2 steps and v7x's 2nd TensorCore gets work.
        tb = max(8, _round_up(pl.cdiv(B, 2), 8))
    grid_steps = pl.cdiv(B, tb)

    # Optional 3-deep input pipeline on long grids with plenty of VMEM (v5e/v6e).
    deep_x = (custom_buffering and grid_steps >= 4 and vmem_cap >= (100 << 20)
              and resident + per_row * tb + tb * F * x_elem <= int(0.70 * vmem_budget))
    x_bufs = 3 if deep_x else 2

    needed = resident + x_bufs * tb * F * x_elem + 2 * tb * cpad * out_elem
    vmem_limit = int(min(max(int(1.25 * needed), 8 << 20), vmem_budget))

    # ---------------- specs -----------------------------------------------------------------
    x_spec = pl.BlockSpec((tb, F), lambda i: (i, 0))
    w_spec = pl.BlockSpec((F, cpad), lambda i: (0, 0))
    b_spec = pl.BlockSpec((1, cpad), lambda i: (0, 0))
    if custom_buffering:
        if deep_x:
            x_spec = pl.BlockSpec((tb, F), lambda i: (i, 0), pipeline_mode=pl.Buffered(3))
        # Block index never changes -> double-buffering the weights is pure VMEM waste.
        w_spec = pl.BlockSpec((F, cpad), lambda i: (0, 0), pipeline_mode=pl.Buffered(1))
        b_spec = pl.BlockSpec((1, cpad), lambda i: (0, 0), pipeline_mode=pl.Buffered(1))

    cost = pl.CostEstimate(
        flops=2 * B * F * cpad,
        transcendentals=(B * cpad) if elu_in_kernel else 0,
        bytes_accessed=B * F * x_elem + B * cpad * out_elem + F * cpad * w_elem + cpad * 4,
    )

    packed = pl.pallas_call(
        functools.partial(_kmm_fused_kernel, var_col=var_col, apply_elu=elu_in_kernel),
        out_shape=jax.ShapeDtypeStruct((B, cpad), out_dtype),
        grid=(grid_steps,),
        in_specs=[x_spec, w_spec, b_spec],
        out_specs=pl.BlockSpec((tb, cpad), lambda i: (i, 0)),
        compiler_params=pltpu.CompilerParams(
            dimension_semantics=("parallel",),
            vmem_limit_bytes=vmem_limit,
        ),
        cost_estimate=cost,
    )(x, w_cat, b_cat)

    if return_packed:
        return packed

    pi = packed[:, :C]
    mu = packed[:, C:2 * C]
    if elu_in_kernel:
        var = jnp.broadcast_to(packed[:, var_col:var_col + 1], (B, C))
    else:
        # B-element ELU/offset, fuses with the slice — effectively free.
        v = packed[:, var_col:var_col + 1].astype(jnp.float32)
        elu = jnp.where(v > 0, v, jnp.expm1(jnp.minimum(v, 0.0)))
        var_scalar = (jnp.float32(1e-07) + 1.0 + 1.0 + elu).astype(packed.dtype)
        var = jnp.broadcast_to(var_scalar, (B, C))
    return {"pi": pi, "mu": mu, "var": var}


def init_params(key, in_features, out_classes):
    """Deterministic init mirroring KMM.__init__/reset_parameters (PyTorch (out, in) layout)."""
    k_pi_w, k_pi_b, k_mu_w = jax.random.split(key, 3)
    bound = 1.0 / jnp.sqrt(in_features)
    # pi: default nn.Linear init
    w_pi = jax.random.uniform(k_pi_w, (out_classes, in_features), jnp.float32, -bound, bound)
    b_pi = jax.random.uniform(k_pi_b, (out_classes,), jnp.float32, -bound, bound)
    # mean: uniform_(0.0, 0.1), bias zeros
    w_mu = jax.random.uniform(k_mu_w, (out_classes, in_features), jnp.float32, 0.0, 0.1)
    b_mu = jnp.zeros((out_classes,), jnp.float32)
    # var (RBF): Linear(F, 1), weight ones, bias zeros
    w_var = jnp.ones((1, in_features), jnp.float32)
    b_var = jnp.zeros((1,), jnp.float32)
    return w_pi, b_pi, w_mu, b_mu, w_var, b_var


def _reference(x, w_pi, b_pi, w_mu, b_mu, w_var, b_var, num_classes):
    pi = x @ w_pi.T + b_pi
    mu = x @ w_mu.T + b_mu
    v = x @ w_var.T + b_var
    elu = jnp.where(v > 0, v, jnp.expm1(v))
    var = 1e-07 + 1.0 + 1.0 + elu                        # (B, 1)
    var = jnp.repeat(var.reshape(-1), num_classes).reshape(-1, num_classes)
    return pi, mu, var


if __name__ == "__main__":
    B, F, C = 8, 32, 16                                  # batch, in_features, out_classes
    key = jax.random.PRNGKey(0)
    k_x, k_p = jax.random.split(key)
    x = jax.random.normal(k_x, (B, F), jnp.float32)
    raw_params = init_params(k_p, F, C)

    # One-time weight prep (out of the per-call path). f32 test path; production can pass
    # compute_dtype=jnp.bfloat16 (+ out_dtype=jnp.bfloat16 in kmm_forward) for ~2x HBM savings.
    w_cat, b_cat = prepare_params(*raw_params)

    try:
        out = kmm_forward(x, w_cat, b_cat, num_classes=C)
    except Exception:
        # Version-robust fallback: some JAX builds do not accept BlockSpec(pipeline_mode=...);
        # rerun with default (double) buffering everywhere.
        out = kmm_forward(x, w_cat, b_cat, num_classes=C, custom_buffering=False)
    jax.block_until_ready(out)

    ref_pi, ref_mu, ref_var = _reference(x, *raw_params, num_classes=C)
    assert jnp.allclose(out["pi"], ref_pi, atol=1e-4, rtol=1e-4)
    assert jnp.allclose(out["mu"], ref_mu, atol=1e-4, rtol=1e-4)
    assert jnp.allclose(out["var"], ref_var, atol=1e-4, rtol=1e-4)

    print("KERNEL_OK")
</pallas_src>

<mosaic_0001>
module attributes {stable_mosaic.version = 11 : i64} {
  func.func @_kmm_fused_kernel(%arg0: i32, %arg1: memref<8x32xf32, #tpu.memory_space<vmem>>, %arg2: memref<32x128xf32, #tpu.memory_space<vmem>>, %arg3: memref<1x128xf32, #tpu.memory_space<vmem>>, %arg4: memref<8x128xf32, #tpu.memory_space<vmem>>) attributes {dimension_semantics = [#tpu.dimension_semantics<parallel>], iteration_bounds = array<i64: 1>, scalar_prefetch = 0 : i64, scratch_operands = 0 : i64, tpu.core_type = #tpu.core_type<tc>, window_params = [{transform_indices = @transform_0, window_bounds = array<i64: 8, 32>}, {pipeline_mode = #tpu.pipeline_mode<synchronous>, transform_indices = @transform_1, window_bounds = array<i64: 32, 128>}, {pipeline_mode = #tpu.pipeline_mode<synchronous>, transform_indices = @transform_2, window_bounds = array<i64: 1, 128>}, {transform_indices = @transform_3, window_bounds = array<i64: 8, 128>}]} {
    %c0 = arith.constant 0 : index
    %c0_0 = arith.constant 0 : index
    %0 = vector.load %arg1[%c0, %c0_0] : memref<8x32xf32, #tpu.memory_space<vmem>>, vector<8x32xf32>
    %c0_1 = arith.constant 0 : index
    %c0_2 = arith.constant 0 : index
    %1 = vector.load %arg2[%c0_1, %c0_2] : memref<32x128xf32, #tpu.memory_space<vmem>>, vector<32x128xf32>
    %cst = arith.constant dense<0.000000e+00> : vector<8x128xf32>
    %2 = tpu.matmul %0, %1, %cst {dimension_numbers = #tpu.dot_dimension_numbers<[1], [0], [0], [1], [0, 0, 1, 1], [], []>} : vector<8x32xf32>, vector<32x128xf32>, vector<8x128xf32> -> vector<8x128xf32>
    %c0_3 = arith.constant 0 : index
    %c0_4 = arith.constant 0 : index
    %3 = vector.load %arg3[%c0_3, %c0_4] : memref<1x128xf32, #tpu.memory_space<vmem>>, vector<1x128xf32>
    %4 = vector.broadcast %3 : vector<1x128xf32> to vector<8x128xf32>
    %5 = arith.addf %2, %4 : vector<8x128xf32>
    %c0_5 = arith.constant 0 : index
    %c0_6 = arith.constant 0 : index
    %6 = vector.load %arg4[%c0_5, %c0_6] : memref<8x128xf32, #tpu.memory_space<vmem>>, vector<8x128xf32>
    tpu.vector_store %arg4[%c0_5, %c0_6], %5 {strides = array<i32>} : memref<8x128xf32, #tpu.memory_space<vmem>>, vector<8x128xf32>,
    return
  }
  func.func @transform_0(%arg0: i32) -> (i32, i32) {
    %c0_i32 = arith.constant 0 : i32
    %c0_i32_0 = arith.constant 0 : i32
    return %arg0, %c0_i32 : i32, i32
  }
  func.func @transform_1(%arg0: i32) -> (i32, i32) {
    %c0_i32 = arith.constant 0 : i32
    %c0_i32_0 = arith.constant 0 : i32
    %c0_i32_1 = arith.constant 0 : i32
    return %c0_i32, %c0_i32_0 : i32, i32
  }
  func.func @transform_2(%arg0: i32) -> (i32, i32) {
    %c0_i32 = arith.constant 0 : i32
    %c0_i32_0 = arith.constant 0 : i32
    %c0_i32_1 = arith.constant 0 : i32
    return %c0_i32, %c0_i32_0 : i32, i32
  }
  func.func @transform_3(%arg0: i32) -> (i32, i32) {
    %c0_i32 = arith.constant 0 : i32
    %c0_i32_0 = arith.constant 0 : i32
    return %arg0, %c0_i32 : i32, i32
  }
}

module attributes {stable_mosaic.version = 11 : i64} {
  func.func @_kmm_fused_kernel(%arg0: i32, %arg1: memref<8x32xf32, #tpu.memory_space<vmem>>, %arg2: memref<32x128xf32, #tpu.memory_space<vmem>>, %arg3: memref<1x128xf32, #tpu.memory_space<vmem>>, %arg4: memref<8x128xf32, #tpu.memory_space<vmem>>) attributes {dimension_semantics = [#tpu.dimension_semantics<parallel>], iteration_bounds = array<i64: 1>, scalar_prefetch = 0 : i64, scratch_operands = 0 : i64, tpu.core_type = #tpu.core_type<tc>, window_params = [{transform_indices = @transform_0, window_bounds = array<i64: 8, 32>}, {pipeline_mode = #tpu.pipeline_mode<synchronous>, transform_indices = @transform_1, window_bounds = array<i64: 32, 128>}, {pipeline_mode = #tpu.pipeline_mode<synchronous>, transform_indices = @transform_2, window_bounds = array<i64: 1, 128>}, {transform_indices = @transform_3, window_bounds = array<i64: 8, 128>}]} {
    %c0 = arith.constant 0 : index
    %c0_0 = arith.constant 0 : index
    %0 = vector.load %arg1[%c0, %c0_0] : memref<8x32xf32, #tpu.memory_space<vmem>>, vector<8x32xf32>
    %c0_1 = arith.constant 0 : index
    %c0_2 = arith.constant 0 : index
    %1 = vector.load %arg2[%c0_1, %c0_2] : memref<32x128xf32, #tpu.memory_space<vmem>>, vector<32x128xf32>
    %cst = arith.constant dense<0.000000e+00> : vector<8x128xf32>
    %2 = tpu.matmul %0, %1, %cst {dimension_numbers = #tpu.dot_dimension_numbers<[1], [0], [0], [1], [0, 0, 1, 1], [], []>} : vector<8x32xf32>, vector<32x128xf32>, vector<8x128xf32> -> vector<8x128xf32>
    %c0_3 = arith.constant 0 : index
    %c0_4 = arith.constant 0 : index
    %3 = vector.load %arg3[%c0_3, %c0_4] : memref<1x128xf32, #tpu.memory_space<vmem>>, vector<1x128xf32>
    %4 = vector.broadcast %3 : vector<1x128xf32> to vector<8x128xf32>
    %5 = arith.addf %2, %4 : vector<8x128xf32>
    %c0_5 = arith.constant 0 : index
    %c0_6 = arith.constant 0 : index
    %6 = vector.load %arg4[%c0_5, %c0_6] : memref<8x128xf32, #tpu.memory_space<vmem>>, vector<8x128xf32>
    tpu.vector_store %arg4[%c0_5, %c0_6], %5 {strides = array<i32>} : memref<8x128xf32, #tpu.memory_space<vmem>>, vector<8x128xf32>,
    return
  }
  func.func @transform_0(%arg0: i32) -> (i32, i32) {
    %c0_i32 = arith.constant 0 : i32
    %c0_i32_0 = arith.constant 0 : i32
    return %arg0, %c0_i32 : i32, i32
  }
  func.func @transform_1(%arg0: i32) -> (i32, i32) {
    %c0_i32 = arith.constant 0 : i32
    %c0_i32_0 = arith.constant 0 : i32
    %c0_i32_1 = arith.constant 0 : i32
    return %c0_i32, %c0_i32_0 : i32, i32
  }
  func.func @transform_2(%arg0: i32) -> (i32, i32) {
    %c0_i32 = arith.constant 0 : i32
    %c0_i32_0 = arith.constant 0 : i32
    %c0_i32_1 = arith.constant 0 : i32
    return %c0_i32, %c0_i32_0 : i32, i32
  }
  func.func @transform_3(%arg0: i32) -> (i32, i32) {
    %c0_i32 = arith.constant 0 : i32
    %c0_i32_0 = arith.constant 0 : i32
    return %arg0, %c0_i32 : i32, i32
  }
}

</mosaic_0001>

<llo_original>
// kernel: kmm_forward.1
$region0: #{kmm_forward.1}
  #allocation0 [shape = 'u32[]', space=smem, size = 0x4, offset = 0x4, fixed_abs, tag = 'smem constant byte address 0x4 - core index']
  #allocation1 [shape = 'u32[72,128]{1,0:T(1,128)}', space=vmem, size = 0x9000, scoped, tag = 'internal scratch']
  %s0 = inlined_call_operand.hbm [shape: f32[8,32], index: 0, kind: input, shape index: {}]
  %s1 = inlined_call_operand.hbm [shape: f32[32,128], index: 1, kind: input, shape index: {}]
  %s2 = inlined_call_operand.vmem [shape: f32[1,128], index: 2, kind: input, shape index: {}]
  %s3 = inlined_call_operand.vmem [shape: f32[8,128], index: 3, kind: output, shape index: {}]
  %s4 = sld [smem:[#allocation0]]
  $region30: #{kmm_forward.1} parent=0
    _
  %s6 = ssub.s32 1, %s4
  %s7 = scalar_select 0, %s6, %s4
  $region1: #{kmm_forward.1} parent=0
    #allocation2 [shape = 'u8[4096]{0}', space=vmem, size = 0x1000, scoped, tag = 'input window, operand 0, single buffered']
    #allocation3 [shape = 's32[1]{0}', space=sflag, size = 0x4, scoped, tag = 'scoped memory for kmm_forward.1']
    #allocation4 [shape = 'u8[16384]{0}', space=vmem, size = 0x4000, scoped, tag = 'input window, operand 1, single buffered']
    #allocation5 [shape = 's32[1]{0}', space=sflag, size = 0x4, scoped, tag = 'scoped memory for kmm_forward.1']
    %8 = vsyncpa [#allocation3], 0
    %9 = vsyncpa [#allocation5], 0
    // Predicated region
    $region2: #{kmm_forward.1} parent=1 // pred_check
      _
    $region3: #{kmm_forward.1} parent=1 // pred_check_branch
      %11 = sbr.rel (0) target = $region5
    $region4: #{kmm_forward.1} parent=1 // pred_region
      %13 = vsyncadd [#allocation3], 0
      %s15 = sshll.u32 %s0, 4
      %s16 = int_to_ptr.hbm [resolvable:$true] %s15
      %s17 = sshll.u32 [#allocation2], 4
      %s18 = int_to_ptr.vmem [resolvable:$true] %s17
      %20 = dma.hbm_to_vmem [thread:$0]  %s16, 128, %s18, [#allocation3]
    $region5: #{kmm_forward.1} parent=1 // pred_fallthru
      _
    // Predicated region
    $region6: #{kmm_forward.1} parent=1 // pred_check
      _
    $region7: #{kmm_forward.1} parent=1 // pred_check_branch
      %22 = sbr.rel (0) target = $region9
    $region8: #{kmm_forward.1} parent=1 // pred_region
      %24 = vsyncadd [#allocation5], 0
      %s25 = sshll.u32 %s1, 4
      %s26 = int_to_ptr.hbm [resolvable:$true] %s25
      %s27 = sshll.u32 [#allocation4], 4
      %s28 = int_to_ptr.vmem [resolvable:$true] %s27
      %33 = dma.hbm_to_vmem [thread:$0]  %s26, 512, %s28, [#allocation5], 128, 128, 8
    $region9: #{kmm_forward.1} parent=1 // pred_fallthru
      _
    // Predicated region
    $region10: #{kmm_forward.1} parent=1 // pred_check
      _
    $region11: #{kmm_forward.1} parent=1 // pred_check_branch
      %35 = sbr.rel (0) target = $region13
    $region12: #{kmm_forward.1} parent=1 // pred_region
      _
    $region13: #{kmm_forward.1} parent=1 // pred_fallthru
      _
    // Predicated region
    $region14: #{kmm_forward.1} parent=1 // pred_check
      _
    $region15: #{kmm_forward.1} parent=1 // pred_check_branch
      %37 = sbr.rel (0) target = $region17
    $region16: #{kmm_forward.1} parent=1 // pred_region
      %39 = dma.done [#allocation3], 128
    $region17: #{kmm_forward.1} parent=1 // pred_fallthru
      _
    // Predicated region
    $region18: #{kmm_forward.1} parent=1 // pred_check
      _
    $region19: #{kmm_forward.1} parent=1 // pred_check_branch
      %41 = sbr.rel (0) target = $region21
    $region20: #{kmm_forward.1} parent=1 // pred_region
      %43 = dma.done [#allocation5], 512
    $region21: #{kmm_forward.1} parent=1 // pred_fallthru
      _
    %v44 = vld [vmem:[#allocation2] sm:$0xff]
    %v45 = vld [vmem:[#allocation4] sm:$0xff]
    %v46 = vld [vmem:[#allocation4 + $0x8] sm:$0xff]
    %v47 = vld [vmem:[#allocation4 + $0x10] sm:$0xff]
    %v48 = vld [vmem:[#allocation4 + $0x18] sm:$0xff]
    %v49 = vld [vmem:[%s2] sm:$0x1]
    %v51 = vperm.slane %v49, 0
    %vm53 = vcmask 261120
    %v55 = vsel %vm53, %v44, 0
    %57 = vmatpush.msra.mxu0 0.0
    %58 = vmatpush.msra.mxu0 0.0
    %59 = vmatpush.msra.mxu0 0.0
    %60 = vmatpush.msra.mxu0 0.0
    %61 = vmatpush.msra.mxu0 0.0
    %62 = vmatpush.msra.mxu0 0.0
    %63 = vmatpush.msra.mxu0 0.0
    %64 = vmatpush.msra.mxu0 0.0
    %65 = vmatpush.msra.mxu0 0.0
    %66 = vmatpush.msra.mxu0 0.0
    %67 = vmatpush.msra.mxu0 0.0
    %68 = vmatpush.msra.mxu0 0.0
    %69 = vmatpush.msra.mxu0 %v48
    %70 = vmatpush.msra.mxu0 %v47
    %71 = vmatpush.msra.mxu0 %v46
    %72 = vmatpush.msra.mxu0 %v45
    %73 = vmatmul.f32.gmra.mxu0 %v55
    %v74 = vpop.f32.mrf.mxu0
    %v75 = vadd.f32 %v51, %v74
    %76 = vdwg.mxu0
    %77 = vst [vmem:[%s3] sm:$0xff] %v75
    // Predicated region
    $region22: #{kmm_forward.1} parent=1 // pred_check
      _
    $region23: #{kmm_forward.1} parent=1 // pred_check_branch
      %79 = sbr.rel (0) target = $region25
    $region24: #{kmm_forward.1} parent=1 // pred_region
      _
    $region25: #{kmm_forward.1} parent=1 // pred_fallthru
      _
    // Predicated region
    $region26: #{kmm_forward.1} parent=1 // pred_check
      _
    $region27: #{kmm_forward.1} parent=1 // pred_check_branch
      %81 = sbr.rel (0) target = $region29
    $region28: #{kmm_forward.1} parent=1 // pred_region
      _
    $region29: #{kmm_forward.1} parent=1 // pred_fallthru
      _
    %82 = vsyncpa [#allocation3], 1
    %83 = vsyncpa [#allocation5], 1

// kernel: kmm_forward.1
$region0: #{kmm_forward.1}
  #allocation0 [shape = 'u32[]', space=smem, size = 0x4, offset = 0x4, fixed_abs, tag = 'smem constant byte address 0x4 - core index']
  #allocation1 [shape = 'u32[72,128]{1,0:T(1,128)}', space=vmem, size = 0x9000, scoped, tag = 'internal scratch']
  %s0 = inlined_call_operand.hbm [shape: f32[8,32], index: 0, kind: input, shape index: {}]
  %s1 = inlined_call_operand.hbm [shape: f32[32,128], index: 1, kind: input, shape index: {}]
  %s2 = inlined_call_operand.vmem [shape: f32[1,128], index: 2, kind: input, shape index: {}]
  %s3 = inlined_call_operand.vmem [shape: f32[8,128], index: 3, kind: output, shape index: {}]
  %s4 = sld [smem:[#allocation0]]
  $region30: #{kmm_forward.1} parent=0
    _
  %s6 = ssub.s32 1, %s4
  %s7 = scalar_select 0, %s6, %s4
  $region1: #{kmm_forward.1} parent=0
    #allocation2 [shape = 'u8[4096]{0}', space=vmem, size = 0x1000, scoped, tag = 'input window, operand 0, single buffered']
    #allocation3 [shape = 's32[1]{0}', space=sflag, size = 0x4, scoped, tag = 'scoped memory for kmm_forward.1']
    #allocation4 [shape = 'u8[16384]{0}', space=vmem, size = 0x4000, scoped, tag = 'input window, operand 1, single buffered']
    #allocation5 [shape = 's32[1]{0}', space=sflag, size = 0x4, scoped, tag = 'scoped memory for kmm_forward.1']
    %8 = vsyncpa [#allocation3], 0
    %9 = vsyncpa [#allocation5], 0
    // Predicated region
    $region2: #{kmm_forward.1} parent=1 // pred_check
      _
    $region3: #{kmm_forward.1} parent=1 // pred_check_branch
      %11 = sbr.rel (0) target = $region5
    $region4: #{kmm_forward.1} parent=1 // pred_region
      %13 = vsyncadd [#allocation3], 0
      %s15 = sshll.u32 %s0, 4
      %s16 = int_to_ptr.hbm [resolvable:$true] %s15
      %s17 = sshll.u32 [#allocation2], 4
      %s18 = int_to_ptr.vmem [resolvable:$true] %s17
      %20 = dma.hbm_to_vmem [thread:$0]  %s16, 128, %s18, [#allocation3]
    $region5: #{kmm_forward.1} parent=1 // pred_fallthru
      _
    // Predicated region
    $region6: #{kmm_forward.1} parent=1 // pred_check
      _
    $region7: #{kmm_forward.1} parent=1 // pred_check_branch
      %22 = sbr.rel (0) target = $region9
    $region8: #{kmm_forward.1} parent=1 // pred_region
      %24 = vsyncadd [#allocation5], 0
      %s25 = sshll.u32 %s1, 4
      %s26 = int_to_ptr.hbm [resolvable:$true] %s25
      %s27 = sshll.u32 [#allocation4], 4
      %s28 = int_to_ptr.vmem [resolvable:$true] %s27
      %33 = dma.hbm_to_vmem [thread:$0]  %s26, 512, %s28, [#allocation5], 128, 128, 8
    $region9: #{kmm_forward.1} parent=1 // pred_fallthru
      _
    // Predicated region
    $region10: #{kmm_forward.1} parent=1 // pred_check
      _
    $region11: #{kmm_forward.1} parent=1 // pred_check_branch
      %35 = sbr.rel (0) target = $region13
    $region12: #{kmm_forward.1} parent=1 // pred_region
      _
    $region13: #{kmm_forward.1} parent=1 // pred_fallthru
      _
    // Predicated region
    $region14: #{kmm_forward.1} parent=1 // pred_check
      _
    $region15: #{kmm_forward.1} parent=1 // pred_check_branch
      %37 = sbr.rel (0) target = $region17
    $region16: #{kmm_forward.1} parent=1 // pred_region
      %39 = dma.done [#allocation3], 128
    $region17: #{kmm_forward.1} parent=1 // pred_fallthru
      _
    // Predicated region
    $region18: #{kmm_forward.1} parent=1 // pred_check
      _
    $region19: #{kmm_forward.1} parent=1 // pred_check_branch
      %41 = sbr.rel (0) target = $region21
    $region20: #{kmm_forward.1} parent=1 // pred_region
      %43 = dma.done [#allocation5], 512
    $region21: #{kmm_forward.1} parent=1 // pred_fallthru
      _
    %v44 = vld [vmem:[#allocation2] sm:$0xff]
    %v45 = vld [vmem:[#allocation4] sm:$0xff]
    %v46 = vld [vmem:[#allocation4 + $0x8] sm:$0xff]
    %v47 = vld [vmem:[#allocation4 + $0x10] sm:$0xff]
    %v48 = vld [vmem:[#allocation4 + $0x18] sm:$0xff]
    %v49 = vld [vmem:[%s2] sm:$0x1]
    %v51 = vperm.slane %v49, 0
    %vm53 = vcmask 261120
    %v55 = vsel %vm53, %v44, 0
    %57 = vmatpush.msra.mxu0 0.0
    %58 = vmatpush.msra.mxu0 0.0
    %59 = vmatpush.msra.mxu0 0.0
    %60 = vmatpush.msra.mxu0 0.0
    %61 = vmatpush.msra.mxu0 0.0
    %62 = vmatpush.msra.mxu0 0.0
    %63 = vmatpush.msra.mxu0 0.0
    %64 = vmatpush.msra.mxu0 0.0
    %65 = vmatpush.msra.mxu0 0.0
    %66 = vmatpush.msra.mxu0 0.0
    %67 = vmatpush.msra.mxu0 0.0
    %68 = vmatpush.msra.mxu0 0.0
    %69 = vmatpush.msra.mxu0 %v48
    %70 = vmatpush.msra.mxu0 %v47
    %71 = vmatpush.msra.mxu0 %v46
    %72 = vmatpush.msra.mxu0 %v45
    %73 = vmatmul.f32.gmra.mxu0 %v55
    %v74 = vpop.f32.mrf.mxu0
    %v75 = vadd.f32 %v51, %v74
    %76 = vdwg.mxu0
    %77 = vst [vmem:[%s3] sm:$0xff] %v75
    // Predicated region
    $region22: #{kmm_forward.1} parent=1 // pred_check
      _
    $region23: #{kmm_forward.1} parent=1 // pred_check_branch
      %79 = sbr.rel (0) target = $region25
    $region24: #{kmm_forward.1} parent=1 // pred_region
      _
    $region25: #{kmm_forward.1} parent=1 // pred_fallthru
      _
    // Predicated region
    $region26: #{kmm_forward.1} parent=1 // pred_check
      _
    $region27: #{kmm_forward.1} parent=1 // pred_check_branch
      %81 = sbr.rel (0) target = $region29
    $region28: #{kmm_forward.1} parent=1 // pred_region
      _
    $region29: #{kmm_forward.1} parent=1 // pred_fallthru
      _
    %82 = vsyncpa [#allocation3], 1
    %83 = vsyncpa [#allocation5], 1

</llo_original>
